<compile_context>
chip_gen: v7x
topology: tpu7x:2x2x1
jax: 0.10.0
libtpu: 0.0.40
codegen_flags: <defaults>
</compile_context>

<pallas_src>
import functools

import jax
import jax.numpy as jnp
from jax.experimental import pallas as pl
from jax.experimental.pallas import tpu as pltpu

_NEG_BIG = -1e30  # -inf-safe fill for padded-class bias entries (f32 only!)


def _round_up(a: int, m: int) -> int:
    return ((a + m - 1) // m) * m


def _make_ce_kernel(batch: int, tile_b: int):
    """Kernel: mean softmax cross-entropy over a batch-tiled grid."""
    inv_batch = 1.0 / batch

    def kernel(x_ref, w_ref, b_ref, lbl_ref, ce_ref, acc_ref):
        i = pl.program_id(0)

        @pl.when(i == 0)
        def _init():
            acc_ref[0] = jnp.float32(0.0)

        x = x_ref[...]                      # (TB, D)  bf16
        w = w_ref[...]                      # (D, Cp)  bf16 (grid-resident)
        b = b_ref[...]                      # (1, Cp)  f32, padded cols -1e30
        lbl = lbl_ref[...]                  # (TB, 1)  int32

        # pNN forward pass: bf16 MXU matmul with f32 accumulation + f32 bias.
        # Padded class columns (zero W cols + -1e30 bias) never win the row
        # max and exp() underflows to exactly 0 for them.
        logits = jnp.dot(x, w, preferred_element_type=jnp.float32) + b  # (TB, Cp)

        # Numerically-stable log-softmax cross-entropy pieces (all f32).
        m = jnp.max(logits, axis=-1, keepdims=True)                      # (TB, 1)
        lse = m + jnp.log(jnp.sum(jnp.exp(logits - m), axis=-1,
                                  keepdims=True))                        # (TB, 1)

        # In-kernel one-hot: class-index iota compared against the label tile.
        cls = jax.lax.broadcasted_iota(jnp.int32, logits.shape, 1)       # (TB, Cp)
        true_logit = jnp.sum(jnp.where(cls == lbl, logits, 0.0),
                             axis=-1, keepdims=True)                     # (TB, 1)

        # Row-validity mask: rows past the real batch (ragged last tile) are
        # garbage reads; jnp.where keeps any NaN/Inf there from propagating.
        row = i * tile_b + jax.lax.broadcasted_iota(jnp.int32, (tile_b, 1), 0)
        contrib = jnp.where(row < batch, lse - true_logit, 0.0)          # (TB, 1)

        acc_ref[0] += jnp.sum(contrib)

        @pl.when(i == pl.num_programs(0) - 1)
        def _finalize():
            ce_ref[0] = acc_ref[0] * jnp.float32(inv_batch)

    return kernel


def _mean_cross_entropy(x, w, b, labels, *, tile_b=512):
    """Single pallas_call computing mean softmax cross-entropy of x@W+b vs labels."""
    B, D = x.shape
    C = w.shape[1]
    f32 = jnp.float32
    bf16 = jnp.bfloat16

    # Lane-dense class padding.
    Cp = _round_up(C, 128)

    # Batch tiling: one sublane-aligned tile for small batches, else 512-row
    # tiles with the ragged remainder handled by the in-kernel row mask
    # (no pad-copy of x / labels through HBM).
    TB = _round_up(B, 8) if B <= tile_b else tile_b
    n_tiles = -(-B // TB)

    x_in = x.astype(bf16)                                   # no pad-copy
    lbl_in = labels.astype(jnp.int32).reshape(B, 1)         # tiny int32 stream

    if Cp == C:
        w_in = w.astype(bf16)
        b_in = b.astype(f32).reshape(1, C)
    else:
        w_in = jnp.zeros((D, Cp), bf16).at[:, :C].set(w.astype(bf16))
        b_in = jnp.full((1, Cp), _NEG_BIG, f32).at[0, :C].set(b.astype(f32))

    # Explicit VMEM budget: double-buffered x/label tiles, resident W/bias,
    # plus the in-kernel (TB, Cp) f32 logits/exp/iota temporaries.
    vmem_bytes = (
        2 * TB * D * 2            # x tiles (bf16, double buffered)
        + 2 * D * Cp * 2          # W (bf16, constant index map)
        + 2 * 8 * Cp * 4          # bias (f32, tile-padded)
        + 2 * TB * 128 * 4        # label tiles (int32, lane-padded)
        + 5 * TB * Cp * 4         # logits / exp / iota temporaries
        + (2 << 20))              # headroom
    vmem_limit = int(min(max(vmem_bytes, 8 << 20), 100 << 20))

    ce = pl.pallas_call(
        _make_ce_kernel(B, TB),
        out_shape=jax.ShapeDtypeStruct((1,), f32),
        grid_spec=pltpu.PrefetchScalarGridSpec(
            num_scalar_prefetch=0,
            grid=(n_tiles,),
            in_specs=[
                pl.BlockSpec((TB, D), lambda i: (i, 0)),    # x tile (pipelined)
                pl.BlockSpec((D, Cp), lambda i: (0, 0)),    # W resident
                pl.BlockSpec((1, Cp), lambda i: (0, 0)),    # bias resident
                pl.BlockSpec((TB, 1), lambda i: (i, 0)),    # int32 label tile
            ],
            out_specs=pl.BlockSpec(memory_space=pltpu.MemorySpace.SMEM),
            scratch_shapes=[pltpu.SMEM((1,), f32)],         # CE numerator
        ),
        compiler_params=pltpu.CompilerParams(
            dimension_semantics=("arbitrary",),             # serial accumulation
            vmem_limit_bytes=vmem_limit,
        ),
    )(x_in, w_in, b_in, lbl_in)
    return ce[0]


class Args:
    """Hyper-parameters mirroring the PyTorch `args` namespace."""
    powerestimator = "power"   # or "AL"
    powerbalance = 0.3
    POWER = 1.0
    lambda_ = 0.1
    mu = 0.01


@functools.partial(jax.jit, static_argnames=("mode",))
def lossfunction_forward(x, w, b, labels, mode,
                         powerbalance, POWER, lambda_, mu):
    """JAX equivalent of Lossfunction.forward(nn, x, label)."""
    ce = _mean_cross_entropy(x, w, b, labels)

    # TODO(synk): nn.Power is an attribute of the real pNN; use sum(|W|) as a
    # deterministic proxy, kept in f32 outside the kernel (bf16 W in-kernel
    # would distort the dominant power term of the loss).
    power = jnp.sum(jnp.abs(w.astype(jnp.float32)))

    if mode == "power":
        return (1.0 - powerbalance) * ce + powerbalance * power * 100.0
    elif mode == "AL":
        constraint = power - POWER
        psi_pos = lambda_ * constraint + mu / 2.0 * constraint ** 2
        psi_neg = -lambda_ ** 2 / (2.0 * mu)
        psi = jnp.where(lambda_ + mu * constraint >= 0.0, psi_pos, psi_neg)
        return ce + psi
    else:
        raise ValueError(mode)


if __name__ == "__main__":
    # Small deterministic problem: batch=8, features=32, classes=4.
    B, D, C = 8, 32, 4
    key = jax.random.PRNGKey(0)
    kx, kw, kb, kl = jax.random.split(key, 4)

    x = jax.random.normal(kx, (B, D), dtype=jnp.float32)
    w = jax.random.normal(kw, (D, C), dtype=jnp.float32) * 0.1   # nn weights
    b = jax.random.normal(kb, (C,), dtype=jnp.float32) * 0.1     # nn bias
    labels = jax.random.randint(kl, (B,), 0, C, dtype=jnp.int32)

    args = Args()

    loss_power = lossfunction_forward(
        x, w, b, labels, "power",
        args.powerbalance, args.POWER, args.lambda_, args.mu)
    loss_al = lossfunction_forward(
        x, w, b, labels, "AL",
        args.powerbalance, args.POWER, args.lambda_, args.mu)

    jax.block_until_ready((loss_power, loss_al))

    # Pure-JAX f32 reference of both modes (bf16 matmul in the kernel ->
    # compare with a loose-but-meaningful tolerance).
    logits_ref = x @ w + b
    ce_ref = jnp.mean(
        jax.nn.logsumexp(logits_ref, axis=-1)
        - jnp.take_along_axis(logits_ref, labels[:, None], axis=-1)[:, 0])
    pw_ref = jnp.sum(jnp.abs(w))

    ref_power = (1.0 - args.powerbalance) * ce_ref \
        + args.powerbalance * pw_ref * 100.0
    constraint = pw_ref - args.POWER
    psi_ref = jnp.where(
        args.lambda_ + args.mu * constraint >= 0.0,
        args.lambda_ * constraint + args.mu / 2.0 * constraint ** 2,
        -args.lambda_ ** 2 / (2.0 * args.mu))
    ref_al = ce_ref + psi_ref

    assert jnp.allclose(loss_power, ref_power, rtol=1e-2, atol=1e-2)
    assert jnp.allclose(loss_al, ref_al, rtol=1e-2, atol=1e-2)

    print("KERNEL_OK")
</pallas_src>

<mosaic_0001>
module attributes {stable_mosaic.version = 11 : i64} {
  func.func @kernel(%arg0: i32, %arg1: memref<8x32xbf16, #tpu.memory_space<vmem>>, %arg2: memref<32x128xbf16, #tpu.memory_space<vmem>>, %arg3: memref<1x128xf32, #tpu.memory_space<vmem>>, %arg4: memref<8x1xi32, #tpu.memory_space<vmem>>, %arg5: memref<1xf32, #tpu.memory_space<smem>>, %arg6: memref<1xf32, #tpu.memory_space<smem>>) attributes {dimension_semantics = [#tpu.dimension_semantics<arbitrary>], iteration_bounds = array<i64: 1>, scalar_prefetch = 0 : i64, scratch_operands = 1 : i64, tpu.core_type = #tpu.core_type<tc>, window_params = [{transform_indices = @transform_0, window_bounds = array<i64: 8, 32>}, {pipeline_mode = #tpu.pipeline_mode<synchronous>, transform_indices = @transform_1, window_bounds = array<i64: 32, 128>}, {pipeline_mode = #tpu.pipeline_mode<synchronous>, transform_indices = @transform_2, window_bounds = array<i64: 1, 128>}, {transform_indices = @transform_3, window_bounds = array<i64: 8, 1>}, {transform_indices = @transform_4, window_bounds = array<i64: 1>}]} {
    %c0_i32 = arith.constant 0 : i32
    %0 = arith.cmpi eq, %arg0, %c0_i32 : i32
    %1 = arith.extui %0 : i1 to i32
    %c0_i32_0 = arith.constant 0 : i32
    %2 = arith.cmpi ne, %1, %c0_i32_0 : i32
    scf.if %2 {
      %cst_19 = arith.constant 0.000000e+00 : f32
      %c0_20 = arith.constant 0 : index
      %45 = memref.load %arg6[%c0_20] : memref<1xf32, #tpu.memory_space<smem>>
      memref.store %cst_19, %arg6[%c0_20] : memref<1xf32, #tpu.memory_space<smem>>
    } else {
    }
    %c0 = arith.constant 0 : index
    %c0_1 = arith.constant 0 : index
    %3 = vector.load %arg1[%c0, %c0_1] : memref<8x32xbf16, #tpu.memory_space<vmem>>, vector<8x32xbf16>
    %c0_2 = arith.constant 0 : index
    %c0_3 = arith.constant 0 : index
    %4 = vector.load %arg2[%c0_2, %c0_3] : memref<32x128xbf16, #tpu.memory_space<vmem>>, vector<32x128xbf16>
    %c0_4 = arith.constant 0 : index
    %c0_5 = arith.constant 0 : index
    %5 = vector.load %arg3[%c0_4, %c0_5] : memref<1x128xf32, #tpu.memory_space<vmem>>, vector<1x128xf32>
    %c0_6 = arith.constant 0 : index
    %c0_7 = arith.constant 0 : index
    %6 = vector.load %arg4[%c0_6, %c0_7] : memref<8x1xi32, #tpu.memory_space<vmem>>, vector<8x1xi32>
    %cst = arith.constant dense<0.000000e+00> : vector<8x128xf32>
    %7 = tpu.matmul %3, %4, %cst {dimension_numbers = #tpu.dot_dimension_numbers<[1], [0], [0], [1], [0, 0, 1, 1], [], []>} : vector<8x32xbf16>, vector<32x128xbf16>, vector<8x128xf32> -> vector<8x128xf32>
    %8 = vector.broadcast %5 : vector<1x128xf32> to vector<8x128xf32>
    %9 = arith.addf %7, %8 : vector<8x128xf32>
    %cst_8 = arith.constant dense<0xFF800000> : vector<8xf32>
    %10 = vector.multi_reduction <maximumf>, %9, %cst_8 [1] : vector<8x128xf32> to vector<8xf32>
    %11 = vector.shape_cast %10 : vector<8xf32> to vector<8x1xf32>
    %12 = vector.broadcast %11 : vector<8x1xf32> to vector<8x128xf32>
    %13 = arith.subf %9, %12 : vector<8x128xf32>
    %14 = math.exp %13 : vector<8x128xf32>
    %cst_9 = arith.constant dense<0.000000e+00> : vector<8xf32>
    %15 = vector.multi_reduction <add>, %14, %cst_9 [1] : vector<8x128xf32> to vector<8xf32>
    %16 = vector.shape_cast %15 : vector<8xf32> to vector<8x1xf32>
    %17 = math.log %16 : vector<8x1xf32>
    %18 = arith.addf %11, %17 : vector<8x1xf32>
    %19 = tpu.iota {dimensions = array<i32: 1>} : vector<8x128xi32>
    %20 = vector.broadcast %6 : vector<8x1xi32> to vector<8x128xi32>
    %21 = arith.cmpi eq, %19, %20 : vector<8x128xi32>
    %cst_10 = arith.constant 0.000000e+00 : f32
    %22 = vector.broadcast %cst_10 : f32 to vector<8x128xf32>
    %23 = arith.select %21, %9, %22 : vector<8x128xi1>, vector<8x128xf32>
    %cst_11 = arith.constant dense<0.000000e+00> : vector<8xf32>
    %24 = vector.multi_reduction <add>, %23, %cst_11 [1] : vector<8x128xf32> to vector<8xf32>
    %25 = vector.shape_cast %24 : vector<8xf32> to vector<8x1xf32>
    %c8_i32 = arith.constant 8 : i32
    %26 = arith.muli %arg0, %c8_i32 : i32
    %27 = tpu.iota {dimensions = array<i32: 0>} : vector<8x1xi32>
    %28 = vector.broadcast %26 : i32 to vector<8x1xi32>
    %29 = arith.addi %28, %27 : vector<8x1xi32>
    %c8_i32_12 = arith.constant 8 : i32
    %30 = vector.broadcast %c8_i32_12 : i32 to vector<8x1xi32>
    %31 = arith.cmpi slt, %29, %30 : vector<8x1xi32>
    %32 = arith.subf %18, %25 : vector<8x1xf32>
    %cst_13 = arith.constant 0.000000e+00 : f32
    %33 = vector.broadcast %cst_13 : f32 to vector<8x1xf32>
    %34 = arith.select %31, %32, %33 : vector<8x1xi1>, vector<8x1xf32>
    %c0_14 = arith.constant 0 : index
    %35 = memref.load %arg6[%c0_14] : memref<1xf32, #tpu.memory_space<smem>>
    %36 = vector.shape_cast %34 : vector<8x1xf32> to vector<1x8x1xf32>
    %cst_15 = arith.constant dense<0.000000e+00> : vector<1xf32>
    %37 = vector.multi_reduction <add>, %36, %cst_15 [1, 2] : vector<1x8x1xf32> to vector<1xf32>
    %38 = vector.shape_cast %37 : vector<1xf32> to vector<1x1x1xf32>
    %39 = vector.extract %38[0, 0, 0] : f32 from vector<1x1x1xf32>
    %40 = arith.addf %35, %39 : f32
    %c0_16 = arith.constant 0 : index
    %41 = memref.load %arg6[%c0_16] : memref<1xf32, #tpu.memory_space<smem>>
    memref.store %40, %arg6[%c0_16] : memref<1xf32, #tpu.memory_space<smem>>
    %c0_i32_17 = arith.constant 0 : i32
    %42 = arith.cmpi eq, %arg0, %c0_i32_17 : i32
    %43 = arith.extui %42 : i1 to i32
    %c0_i32_18 = arith.constant 0 : i32
    %44 = arith.cmpi ne, %43, %c0_i32_18 : i32
    scf.if %44 {
      %c0_19 = arith.constant 0 : index
      %45 = memref.load %arg6[%c0_19] : memref<1xf32, #tpu.memory_space<smem>>
      %cst_20 = arith.constant 1.250000e-01 : f32
      %46 = arith.mulf %45, %cst_20 : f32
      %c0_21 = arith.constant 0 : index
      %47 = memref.load %arg5[%c0_21] : memref<1xf32, #tpu.memory_space<smem>>
      memref.store %46, %arg5[%c0_21] : memref<1xf32, #tpu.memory_space<smem>>
    } else {
    }
    return
  }
  func.func @transform_0(%arg0: i32) -> (i32, i32) {
    %c0_i32 = arith.constant 0 : i32
    %c0_i32_0 = arith.constant 0 : i32
    return %arg0, %c0_i32 : i32, i32
  }
  func.func @transform_1(%arg0: i32) -> (i32, i32) {
    %c0_i32 = arith.constant 0 : i32
    %c0_i32_0 = arith.constant 0 : i32
    %c0_i32_1 = arith.constant 0 : i32
    return %c0_i32, %c0_i32_0 : i32, i32
  }
  func.func @transform_2(%arg0: i32) -> (i32, i32) {
    %c0_i32 = arith.constant 0 : i32
    %c0_i32_0 = arith.constant 0 : i32
    %c0_i32_1 = arith.constant 0 : i32
    return %c0_i32, %c0_i32_0 : i32, i32
  }
  func.func @transform_3(%arg0: i32) -> (i32, i32) {
    %c0_i32 = arith.constant 0 : i32
    %c0_i32_0 = arith.constant 0 : i32
    return %arg0, %c0_i32 : i32, i32
  }
  func.func @transform_4(%arg0: i32) -> i32 {
    %c0_i32 = arith.constant 0 : i32
    %c0_i32_0 = arith.constant 0 : i32
    return %c0_i32 : i32
  }
}

</mosaic_0001>

<llo_original>
// kernel: lossfunction_forward.1
$region0: #{lossfunction_forward.1}
  #allocation0 [shape = 'u32[]', space=smem, size = 0x4, offset = 0x4, fixed_abs, tag = 'smem constant byte address 0x4 - core index']
  #allocation1 [shape = 'u32[144,128]{1,0:T(1,128)}', space=vmem, size = 0x12000, scoped, tag = 'internal scratch']
  #allocation2 [shape = 'f32[1]{0:T(128)}', space=smem, size = 0x200, scoped, tag = 'scratch operand']
  %s0 = inlined_call_operand.vmem [shape: bf16[8,32], index: 0, kind: input, shape index: {}]
  %s1 = inlined_call_operand.vmem [shape: bf16[32,128], index: 1, kind: input, shape index: {}]
  %s2 = inlined_call_operand.vmem [shape: f32[1,128], index: 2, kind: input, shape index: {}]
  %s3 = inlined_call_operand.vmem [shape: s32[8,1], index: 3, kind: input, shape index: {}]
  %s4 = inlined_call_operand.hbm [shape: f32[1], index: 4, kind: output, shape index: {}]
  %s5 = sld [smem:[#allocation0]]
  $region34: #{lossfunction_forward.1} parent=0
    _
  %s7 = ssub.s32 1, %s5
  %s8 = scalar_select 0, %s7, %s5
  $region1: #{lossfunction_forward.1} parent=0
    #allocation3 [shape = 'u8[512]{0}', space=smem, size = 0x200, scoped, tag = 'output window, operand 0, single buffered']
    #allocation4 [shape = 's32[1]{0}', space=sflag, size = 0x4, scoped, tag = 'scoped memory for lossfunction_forward.1']
    %9 = vsyncpa [#allocation4], 0
    // Predicated region
    $region2: #{lossfunction_forward.1} parent=1 // pred_check
      _
    $region3: #{lossfunction_forward.1} parent=1 // pred_check_branch
      %11 = sbr.rel (0) target = $region5
    $region4: #{lossfunction_forward.1} parent=1 // pred_region
      _
    $region5: #{lossfunction_forward.1} parent=1 // pred_fallthru
      _
    // Predicated region
    $region6: #{lossfunction_forward.1} parent=1 // pred_check
      _
    $region7: #{lossfunction_forward.1} parent=1 // pred_check_branch
      %13 = sbr.rel (0) target = $region9
    $region8: #{lossfunction_forward.1} parent=1 // pred_region
      _
    $region9: #{lossfunction_forward.1} parent=1 // pred_fallthru
      _
    // Predicated region
    $region10: #{lossfunction_forward.1} parent=1 // pred_check
      _
    $region11: #{lossfunction_forward.1} parent=1 // pred_check_branch
      %15 = sbr.rel (0) target = $region13
    $region12: #{lossfunction_forward.1} parent=1 // pred_region
      _
    $region13: #{lossfunction_forward.1} parent=1 // pred_fallthru
      _
    // Predicated region
    $region14: #{lossfunction_forward.1} parent=1 // pred_check
      _
    $region15: #{lossfunction_forward.1} parent=1 // pred_check_branch
      %17 = sbr.rel (0) target = $region17
    $region16: #{lossfunction_forward.1} parent=1 // pred_region
      _
    $region17: #{lossfunction_forward.1} parent=1 // pred_fallthru
      _
    %p19 = scmp.eq.s32.totalorder 0, 0
    // Predicated region
    $region18: #{lossfunction_forward.1} parent=1 // pred_check
      %p20 = pneg %p19
    $region19: #{lossfunction_forward.1} parent=1 // pred_check_branch
      %22 = sbr.rel (%p20) target = $region21
    $region20: #{lossfunction_forward.1} parent=1 // pred_region
      %s23 = scalar_lea.smem [#allocation2], 0
      %24 = sst [smem:[%s23]] 0.0
    $region21: #{lossfunction_forward.1} parent=1 // pred_fallthru
      _
    %v25 = vld [vmem:[%s0] sm:$0xf]
    %v26 = vld [vmem:[%s1] sm:$0xf]
    %v27 = vld [vmem:[%s1 + $0x4] sm:$0xf]
    %v28 = vld [vmem:[%s1 + $0x8] sm:$0xf]
    %v29 = vld [vmem:[%s1 + $0xc] sm:$0xf]
    %v30 = vld [vmem:[%s2] sm:$0x1]
    %v31 = vld [vmem:[%s3] sm:$0xff]
    %v33 = vlaneseq
    %v34 = vshrl.u32 %v33, 7
    %v35 = vsub.s32 0, %v34
    %v36 = vrot.slane %v30, %v35
    %v42 = vunpack.c.l.b16 %v26
    %v43 = vunpack.c.l.b16 %v27
    %v44 = vunpack.c.l.b16 %v28
    %v45 = vunpack.c.l.b16 %v29
    %v46 = vpack.c.b16 %v43, %v42
    %v47 = vpack.c.b16 %v45, %v44
    %vm50 = vcmask 261120
    %v52 = vsel %vm50, %v25, 0
    %54 = vmatprep.subr.bf16.mxu0 0
    %55 = vmatpush1.bf16.msra.mxu0 %v46
    %56 = vmatprep.subr.bf16.mxu0 0
    %57 = vmatpush1.bf16.msra.mxu0 %v47
    %58 = vmatprep.subr.bf16.mxu0 0
    %59 = vmatpush1.bf16.msra.mxu0 0
    %60 = vmatprep.subr.bf16.mxu0 0
    %61 = vmatpush1.bf16.msra.mxu0 0
    %62 = vmatprep.subr.bf16.mxu0 0
    %63 = vmatpush1.bf16.msra.mxu0 0
    %64 = vmatprep.subr.bf16.mxu0 0
    %65 = vmatpush1.bf16.msra.mxu0 0
    %66 = vmatprep.subr.bf16.mxu0 0
    %67 = vmatpush1.bf16.msra.mxu0 0
    %68 = vmatprep.subr.bf16.mxu0 0
    %69 = vmatpush1.bf16.msra.mxu0 0
    %70 = vmatprep.subr.bf16.mxu0 0
    %71 = vmatpush1.bf16.msra.mxu0 0
    %72 = vmatprep.subr.bf16.mxu0 0
    %73 = vmatpush1.bf16.msra.mxu0 0
    %74 = vmatprep.subr.bf16.mxu0 0
    %75 = vmatpush1.bf16.msra.mxu0 0
    %76 = vmatprep.subr.bf16.mxu0 0
    %77 = vmatpush1.bf16.msra.mxu0 0
    %78 = vmatprep.subr.bf16.mxu0 0
    %79 = vmatpush1.bf16.msra.mxu0 0
    %80 = vmatprep.subr.bf16.mxu0 0
    %81 = vmatpush1.bf16.msra.mxu0 0
    %82 = vmatprep.subr.bf16.mxu0 0
    %83 = vmatpush1.bf16.msra.mxu0 0
    %84 = vmatprep.subr.bf16.mxu0 0
    %85 = vmatpush1.bf16.msra.mxu0 0
    %86 = vmatprep.mubr.bf16.mxu0 0
    %87 = vmatmul.mubr.bf16.gmra.mrb[0].mxu0 %v52
    %v88 = vpop.f32.mrb[0].mxu0
    %v89 = vadd.f32 %v36, %v88
    %v90 = vpop.f32.mrb[0].mxu0
    %v91 = vpop.f32.mrb[0].mxu0
    %v92 = vpop.f32.mrb[0].mxu0
    %93 = vdwg.mxu0
    %94 = vmax.xlane.f32.xlu0 %v89
    %v95 = vpop.xlane.xlu0 %94
    %v96 = vsub.f32 %v89, %v95
    %v97 = vmul.f32 %v96, 1.442695
    %v98 = vpow.pop %v97
    %99 = vadd.xlane.f32.xlu0 %v98
    %v100 = vpop.xlane.xlu0 %99
    %v101 = vlog2.pop %v100
    %v102 = vmul.f32 %v101, 0.6931472
    %v103 = vadd.f32 %v95, %v102
    %v104 = vlaneseq
    %v105 = vand.u32 %v104, 127
    %106 = vset.pattern.permute.xlu0 0
    %107 = vperm.xlu0 %106, %v31
    %v108 = vpop.permute.xlu0 %107
    %vm109 = vcmp.eq.s32.totalorder %v105, %v108
    %v110 = vsel %vm109, %v89, 0.0
    %111 = vadd.xlane.f32.xlu0 %v110
    %v112 = vpop.xlane.xlu0 %111
    %s113 = smul.u32 0, 8
    %v114 = vlaneseq
    %v115 = vshrl.u32 %v114, 7
    %v116 = vstv %s113
    %v117 = vadd.s32 %v116, %v115
    %vm118 = vcmp.lt.s32.totalorder %v117, 8
    %v119 = vsub.f32 %v103, %v112
    %v120 = vsel %vm118, %v119, 0.0
    %s121 = sld [smem:[#allocation2]]
    %vm122 = vcmask 7168
    %v123 = vsel %vm122, %v120, 0.0
    %124 = vadd.xlane.f32.xlu0 %v123
    %v125 = vpop.xlane.xlu0 %124
    %v126 = vrot.slane %v125, 4
    %v127 = vadd.f32 %v125, %v126
    %v128 = vrot.slane %v127, 2
    %v129 = vadd.f32 %v127, %v128
    %v130 = vrot.slane %v129, 1
    %v131 = vadd.f32 %v129, %v130
    %s132 = vtos %v131
    %s133 = sadd.f32 %s121, %s132
    %s134 = scalar_lea.smem [#allocation2], 0
    %135 = sst [smem:[%s134]] %s133
    // Predicated region
    $region22: #{lossfunction_forward.1} parent=1 // pred_check
      %p136 = pneg %p19
    $region23: #{lossfunction_forward.1} parent=1 // pred_check_branch
      %138 = sbr.rel (%p136) target = $region25
    $region24: #{lossfunction_forward.1} parent=1 // pred_region
      %s139 = sld [smem:[#allocation2]]
      %s140 = smul.f32 %s139, 0.125
      %s141 = scalar_lea.smem [#allocation3], 0
      %142 = sst [smem:[%s141]] %s140
    $region25: #{lossfunction_forward.1} parent=1 // pred_fallthru
      _
    // Predicated region
    $region26: #{lossfunction_forward.1} parent=1 // pred_check
      _
    $region27: #{lossfunction_forward.1} parent=1 // pred_check_branch
      %144 = sbr.rel (0) target = $region29
    $region28: #{lossfunction_forward.1} parent=1 // pred_region
      %s146 = ssub.s32 16, 16
      %147 = vsyncadd [#allocation4], %s146
      %150 = dma.smem_to_hbm [#allocation3], 16, %s4, [#allocation4]
    $region29: #{lossfunction_forward.1} parent=1 // pred_fallthru
      _
    // Predicated region
    $region30: #{lossfunction_forward.1} parent=1 // pred_check
      _
    $region31: #{lossfunction_forward.1} parent=1 // pred_check_branch
      %152 = sbr.rel (0) target = $region33
    $region32: #{lossfunction_forward.1} parent=1 // pred_region
      %153 = dma.done [#allocation4], 16
    $region33: #{lossfunction_forward.1} parent=1 // pred_fallthru
      _
    %154 = sfence
    %155 = vsyncpa [#allocation4], 1

</llo_original>
